<compile_context>
chip_gen: v6e
topology: v6e:2x2x1
jax: 0.10.0
libtpu: 0.0.40
codegen_flags: <defaults>
</compile_context>

<pallas_src>
import jax
import jax.numpy as jnp
from jax.experimental import pallas as pl
from jax.experimental.pallas import tpu as pltpu


def _round_up(v, m):
    return (v + m - 1) // m * m


def _pad_to(a, shape):
    if tuple(a.shape) == tuple(shape):
        return a
    return jnp.zeros(shape, a.dtype).at[tuple(slice(0, s) for s in a.shape)].set(a)


def _erf(x):
    # Abramowitz & Stegun 7.1.26 rational approximation (|err| <= 1.5e-7, i.e.
    # float32-level accuracy). Only exp/mul/add, so it lowers cleanly in Mosaic.
    a1, a2, a3, a4, a5 = 0.254829592, -0.284496736, 1.421413741, -1.453152027, 1.061405429
    p = 0.3275911
    ax = jnp.abs(x)
    t = 1.0 / (1.0 + p * ax)
    poly = ((((a5 * t + a4) * t + a3) * t + a2) * t + a1) * t
    y = 1.0 - poly * jnp.exp(-ax * ax)
    return jnp.where(x >= 0.0, y, -y)


def _gelu_exact(x):
    # torch.nn.GELU() default (erf formulation)
    return 0.5 * x * (1.0 + _erf(x * 0.7071067811865476))


def gate_kernel(x_ref, gw_ref, gb_ref, g_ref):
    # g[n, b] = gelu(sum_i gates_w[n, i] * x[b, i] + gates_b[n]); computed once.
    logits = jax.lax.dot_general(
        gw_ref[...], x_ref[...],
        dimension_numbers=(((1,), (1,)), ((), ())),   # contract idim with idim
        preferred_element_type=jnp.float32)            # (n, B) f32
    logits = logits + gb_ref[...]                      # (n, 1) broadcasts over B
    g_ref[...] = _gelu_exact(logits)


def moe_kernel(x_ref, w_ref, g_ref, o_ref, acc_ref):
    e = pl.program_id(1)   # expert     (reduction axis)
    k = pl.program_id(2)   # idim tile  (reduction axis)

    @pl.when((e == 0) & (k == 0))
    def _():
        acc_ref[...] = jnp.zeros_like(acc_ref)

    # partial[b, o] = sum_i x[b, i] * w_e[o, i]
    # Native-dtype operands (bf16 MXU-native if the model is bf16), f32 accumulate.
    partial = jax.lax.dot_general(
        x_ref[...], w_ref[...],
        dimension_numbers=(((1,), (1,)), ((), ())),    # contract idim with idim
        preferred_element_type=jnp.float32)            # (B, tn)

    acc_ref[...] += partial * g_ref[...]               # g_ref: (B, 1) f32 gate column

    @pl.when((e == pl.num_programs(1) - 1) & (k == pl.num_programs(2) - 1))
    def _():
        o_ref[...] = acc_ref[...].astype(o_ref.dtype)


def moe_forward(x, weight, gates_w, gates_b, *, tn=512, tk=512):
    """x: (B, idim); weight: (n, odim, idim); gates_w: (n, idim); gates_b: (n,)."""
    B, idim = x.shape
    n, odim, idim_w = weight.shape
    assert idim_w == idim and gates_w.shape == (n, idim) and gates_b.shape == (n,)

    cdt = x.dtype

    # Lane/sublane-aligned padded shapes; tiles are MXU-aligned multiples of 128.
    b_p = _round_up(B, 8)
    i_p = _round_up(idim, 128)
    o_p = _round_up(odim, 128)
    tk = min(tk, i_p)
    tn = min(tn, o_p)
    i_p = _round_up(i_p, tk)
    o_p = _round_up(o_p, tn)

    x_p = _pad_to(x, (b_p, i_p))
    w_p = _pad_to(weight, (n, o_p, i_p))          # keeps (n, odim, idim) layout
    gw_p = _pad_to(gates_w, (n, i_p))
    gb_p = gates_b.reshape(n, 1).astype(jnp.float32)

    # --- gating: computed exactly once (hoisted out of the expert loop) ------
    g = pl.pallas_call(
        gate_kernel,
        out_shape=jax.ShapeDtypeStruct((n, b_p), jnp.float32),
    )(x_p, gw_p, gb_p)
    g3 = g.reshape(n, b_p, 1)                     # per-expert (B, 1) gate blocks

    # --- gate-weighted sum of per-expert linears ------------------------------
    grid = (o_p // tn, n, i_p // tk)              # (parallel, reduce, reduce)
    out_p = pl.pallas_call(
        moe_kernel,
        out_shape=jax.ShapeDtypeStruct((b_p, o_p), cdt),
        grid_spec=pltpu.PrefetchScalarGridSpec(
            num_scalar_prefetch=0,
            grid=grid,
            in_specs=[
                pl.BlockSpec((b_p, tk), lambda j, e, k: (0, k)),
                pl.BlockSpec((None, tn, tk), lambda j, e, k: (e, j, k)),
                pl.BlockSpec((None, b_p, 1), lambda j, e, k: (e, 0, 0)),
            ],
            out_specs=pl.BlockSpec((b_p, tn), lambda j, e, k: (0, j)),
            scratch_shapes=[pltpu.VMEM((b_p, tn), jnp.float32)],
        ),
        compiler_params=pltpu.CompilerParams(
            dimension_semantics=("parallel", "arbitrary", "arbitrary"),
            vmem_limit_bytes=32 * 1024 * 1024),
    )(x_p, w_p, g3)

    return out_p[:B, :odim]


def moe_reference(x, weight, gates_w, gates_b):
    y = jnp.einsum('noi,bi->bno', weight, x)                      # (B, n, odim)
    g = jax.nn.gelu(x @ gates_w.T + gates_b, approximate=False)   # (B, n)
    return jnp.einsum('bno,bn->bo', y, g)


def _make_params(key, B, idim, odim, n, dtype=jnp.float32):
    kx, kw, kgw, kgb = jax.random.split(key, 4)
    bound = (1.0 / idim) ** 0.5
    x = jax.random.normal(kx, (B, idim), dtype=jnp.float32)
    weight = jax.random.uniform(kw, (n, odim, idim), minval=-bound, maxval=bound)
    gates_w = jax.random.uniform(kgw, (n, idim), minval=-bound, maxval=bound)
    gates_b = jax.random.uniform(kgb, (n,), minval=-bound, maxval=bound)
    return (x.astype(dtype), weight.astype(dtype), gates_w.astype(dtype),
            gates_b.astype(jnp.float32))


if __name__ == "__main__":
    # 1) f32, lane-aligned shapes, multi-tile grid over odim / experts / idim.
    B, idim, odim, n = 8, 256, 384, 4
    x, w, gw, gb = _make_params(jax.random.PRNGKey(0), B, idim, odim, n)
    out = jax.block_until_ready(moe_forward(x, w, gw, gb, tn=128, tk=128))
    ref = moe_reference(x, w, gw, gb)
    assert out.shape == (B, odim)
    assert jnp.allclose(out, ref, atol=1e-4, rtol=1e-4), "f32 mismatch vs reference"

    # 2) f32, unaligned small shapes (exercises the padding path).
    B2, idim2, odim2, n2 = 5, 96, 72, 3
    x2, w2, gw2, gb2 = _make_params(jax.random.PRNGKey(1), B2, idim2, odim2, n2)
    out2 = jax.block_until_ready(moe_forward(x2, w2, gw2, gb2))
    ref2 = moe_reference(x2, w2, gw2, gb2)
    assert out2.shape == (B2, odim2)
    assert jnp.allclose(out2, ref2, atol=1e-4, rtol=1e-4), "padded mismatch vs reference"

    # 3) bf16 operands (MXU-native path) with f32 accumulation inside the kernel.
    xb, wb, gwb = (x.astype(jnp.bfloat16), w.astype(jnp.bfloat16),
                   gw.astype(jnp.bfloat16))
    out_b = jax.block_until_ready(moe_forward(xb, wb, gwb, gb, tn=128, tk=128))
    ref_b = moe_reference(xb.astype(jnp.float32), wb.astype(jnp.float32),
                          gwb.astype(jnp.float32), gb)
    assert out_b.dtype == jnp.bfloat16
    assert jnp.allclose(out_b.astype(jnp.float32), ref_b, atol=3e-2, rtol=3e-2), \
        "bf16 mismatch vs reference"

    print("KERNEL_OK")
</pallas_src>

<mosaic_0001>
module attributes {stable_mosaic.version = 11 : i64} {
  func.func @gate_kernel(%arg0: memref<8x256xf32, #tpu.memory_space<vmem>>, %arg1: memref<4x256xf32, #tpu.memory_space<vmem>>, %arg2: memref<4x1xf32, #tpu.memory_space<vmem>>, %arg3: memref<4x8xf32, #tpu.memory_space<vmem>>) attributes {dimension_semantics = [], scalar_prefetch = 0 : i64, scratch_operands = 0 : i64, tpu.core_type = #tpu.core_type<tc>} {
    %c0 = arith.constant 0 : index
    %c0_0 = arith.constant 0 : index
    %0 = vector.load %arg1[%c0, %c0_0] : memref<4x256xf32, #tpu.memory_space<vmem>>, vector<4x256xf32>
    %c0_1 = arith.constant 0 : index
    %c0_2 = arith.constant 0 : index
    %1 = vector.load %arg0[%c0_1, %c0_2] : memref<8x256xf32, #tpu.memory_space<vmem>>, vector<8x256xf32>
    %cst = arith.constant dense<0.000000e+00> : vector<4x8xf32>
    %2 = tpu.matmul %0, %1, %cst {dimension_numbers = #tpu.dot_dimension_numbers<[1], [1], [0], [0], [0, 0, 1, 0], [], []>} : vector<4x256xf32>, vector<8x256xf32>, vector<4x8xf32> -> vector<4x8xf32>
    %c0_3 = arith.constant 0 : index
    %c0_4 = arith.constant 0 : index
    %3 = vector.load %arg2[%c0_3, %c0_4] : memref<4x1xf32, #tpu.memory_space<vmem>>, vector<4x1xf32>
    %4 = vector.broadcast %3 : vector<4x1xf32> to vector<4x8xf32>
    %5 = arith.addf %2, %4 : vector<4x8xf32>
    %cst_5 = arith.constant 5.000000e-01 : f32
    %6 = vector.broadcast %cst_5 : f32 to vector<4x8xf32>
    %7 = arith.mulf %6, %5 : vector<4x8xf32>
    %cst_6 = arith.constant 0.707106769 : f32
    %8 = vector.broadcast %cst_6 : f32 to vector<4x8xf32>
    %9 = arith.mulf %5, %8 : vector<4x8xf32>
    %10 = math.absf %9 : vector<4x8xf32>
    %cst_7 = arith.constant 0.327591091 : f32
    %11 = vector.broadcast %cst_7 : f32 to vector<4x8xf32>
    %12 = arith.mulf %11, %10 : vector<4x8xf32>
    %cst_8 = arith.constant 1.000000e+00 : f32
    %13 = vector.broadcast %cst_8 : f32 to vector<4x8xf32>
    %14 = arith.addf %13, %12 : vector<4x8xf32>
    %cst_9 = arith.constant 1.000000e+00 : f32
    %15 = vector.broadcast %cst_9 : f32 to vector<4x8xf32>
    %16 = arith.divf %15, %14 : vector<4x8xf32>
    %cst_10 = arith.constant 1.06140542 : f32
    %17 = vector.broadcast %cst_10 : f32 to vector<4x8xf32>
    %18 = arith.mulf %17, %16 : vector<4x8xf32>
    %cst_11 = arith.constant -1.45315206 : f32
    %19 = vector.broadcast %cst_11 : f32 to vector<4x8xf32>
    %20 = arith.addf %18, %19 : vector<4x8xf32>
    %21 = arith.mulf %20, %16 : vector<4x8xf32>
    %cst_12 = arith.constant 1.42141378 : f32
    %22 = vector.broadcast %cst_12 : f32 to vector<4x8xf32>
    %23 = arith.addf %21, %22 : vector<4x8xf32>
    %24 = arith.mulf %23, %16 : vector<4x8xf32>
    %cst_13 = arith.constant -0.284496725 : f32
    %25 = vector.broadcast %cst_13 : f32 to vector<4x8xf32>
    %26 = arith.addf %24, %25 : vector<4x8xf32>
    %27 = arith.mulf %26, %16 : vector<4x8xf32>
    %cst_14 = arith.constant 0.254829586 : f32
    %28 = vector.broadcast %cst_14 : f32 to vector<4x8xf32>
    %29 = arith.addf %27, %28 : vector<4x8xf32>
    %30 = arith.mulf %29, %16 : vector<4x8xf32>
    %cst_15 = arith.constant 0.000000e+00 : f32
    %31 = vector.broadcast %cst_15 : f32 to vector<4x8xf32>
    %32 = arith.subf %31, %10 : vector<4x8xf32>
    %33 = arith.mulf %32, %10 : vector<4x8xf32>
    %34 = math.exp %33 : vector<4x8xf32>
    %35 = arith.mulf %30, %34 : vector<4x8xf32>
    %cst_16 = arith.constant 1.000000e+00 : f32
    %36 = vector.broadcast %cst_16 : f32 to vector<4x8xf32>
    %37 = arith.subf %36, %35 : vector<4x8xf32>
    %cst_17 = arith.constant 0.000000e+00 : f32
    %38 = vector.broadcast %cst_17 : f32 to vector<4x8xf32>
    %39 = arith.cmpf oge, %9, %38 : vector<4x8xf32>
    %cst_18 = arith.constant 0.000000e+00 : f32
    %40 = vector.broadcast %cst_18 : f32 to vector<4x8xf32>
    %41 = arith.subf %40, %37 : vector<4x8xf32>
    %42 = arith.select %39, %37, %41 : vector<4x8xi1>, vector<4x8xf32>
    %cst_19 = arith.constant 1.000000e+00 : f32
    %43 = vector.broadcast %cst_19 : f32 to vector<4x8xf32>
    %44 = arith.addf %43, %42 : vector<4x8xf32>
    %45 = arith.mulf %7, %44 : vector<4x8xf32>
    %c0_20 = arith.constant 0 : index
    %c0_21 = arith.constant 0 : index
    %46 = vector.load %arg3[%c0_20, %c0_21] : memref<4x8xf32, #tpu.memory_space<vmem>>, vector<4x8xf32>
    tpu.vector_store %arg3[%c0_20, %c0_21], %45 {strides = array<i32>} : memref<4x8xf32, #tpu.memory_space<vmem>>, vector<4x8xf32>,
    return
  }
}

</mosaic_0001>

<llo_original>
// kernel: tpu_custom_call.1
$region0: #{tpu_custom_call.1}
  #allocation0 [shape = 'u32[]', space=smem, size = 0x4, offset = 0x4, fixed_abs, tag = 'smem constant byte address 0x4 - core index']
  #allocation1 [shape = 'u32[144,128]{1,0:T(1,128)}', space=vmem, size = 0x12000, scoped, tag = 'internal scratch']
  %s0 = inlined_call_operand.hbm [shape: f32[8,256], index: 0, kind: input, shape index: {}]
  %s1 = inlined_call_operand.hbm [shape: f32[4,256], index: 1, kind: input, shape index: {}]
  %s2 = inlined_call_operand.vmem [shape: f32[4,1], index: 2, kind: input, shape index: {}]
  %s3 = inlined_call_operand.hbm [shape: f32[4,8], index: 3, kind: output, shape index: {}]
  %s4 = sld [smem:[#allocation0]]
  $region30: #{tpu_custom_call.1} parent=0
    _
  %s6 = ssub.s32 1, %s4
  %s7 = scalar_select 0, %s6, %s4
  $region1: #{tpu_custom_call.1} parent=0
    #allocation2 [shape = 'u8[8192]{0}', space=vmem, size = 0x2000, scoped, tag = 'input window, operand 0, single buffered']
    #allocation3 [shape = 's32[1]{0}', space=sflag, size = 0x4, scoped, tag = 'scoped memory for tpu_custom_call.1']
    #allocation4 [shape = 's32[1]{0}', space=sflag, size = 0x4, scoped, tag = 'scoped memory for tpu_custom_call.1']
    #allocation5 [shape = 'u8[4096]{0}', space=vmem, size = 0x1000, scoped, tag = 'input window, operand 1, single buffered']
    #allocation6 [shape = 's32[1]{0}', space=sflag, size = 0x4, scoped, tag = 'scoped memory for tpu_custom_call.1']
    #allocation7 [shape = 'u8[2048]{0}', space=vmem, size = 0x800, scoped, tag = 'output window, operand 0, single buffered']
    %8 = vsyncpa [#allocation3], 0
    %9 = vsyncpa [#allocation6], 0
    %10 = vsyncpa [#allocation4], 0
    // Predicated region
    $region2: #{tpu_custom_call.1} parent=1 // pred_check
      _
    $region3: #{tpu_custom_call.1} parent=1 // pred_check_branch
      %12 = sbr.rel (0) target = $region5
    $region4: #{tpu_custom_call.1} parent=1 // pred_region
      %s14 = ssub.s32 256, 256
      %15 = vsyncadd [#allocation3], %s14
      %s17 = sshll.u32 [#allocation2], 4
      %s18 = int_to_ptr.vmem [resolvable:$true] %s17
      %20 = dma.hbm_to_vmem [thread:$0]  %s0, 256, %s18, [#allocation3]
    $region5: #{tpu_custom_call.1} parent=1 // pred_fallthru
      _
    // Predicated region
    $region6: #{tpu_custom_call.1} parent=1 // pred_check
      _
    $region7: #{tpu_custom_call.1} parent=1 // pred_check_branch
      %22 = sbr.rel (0) target = $region9
    $region8: #{tpu_custom_call.1} parent=1 // pred_region
      %s24 = ssub.s32 128, 128
      %25 = vsyncadd [#allocation6], %s24
      %s27 = sshll.u32 [#allocation5], 4
      %s28 = int_to_ptr.vmem [resolvable:$true] %s27
      %30 = dma.hbm_to_vmem [thread:$0]  %s1, 128, %s28, [#allocation6]
    $region9: #{tpu_custom_call.1} parent=1 // pred_fallthru
      _
    // Predicated region
    $region10: #{tpu_custom_call.1} parent=1 // pred_check
      _
    $region11: #{tpu_custom_call.1} parent=1 // pred_check_branch
      %32 = sbr.rel (0) target = $region13
    $region12: #{tpu_custom_call.1} parent=1 // pred_region
      _
    $region13: #{tpu_custom_call.1} parent=1 // pred_fallthru
      _
    // Predicated region
    $region14: #{tpu_custom_call.1} parent=1 // pred_check
      _
    $region15: #{tpu_custom_call.1} parent=1 // pred_check_branch
      %34 = sbr.rel (0) target = $region17
    $region16: #{tpu_custom_call.1} parent=1 // pred_region
      %35 = dma.done [#allocation3], 256
    $region17: #{tpu_custom_call.1} parent=1 // pred_fallthru
      _
    // Predicated region
    $region18: #{tpu_custom_call.1} parent=1 // pred_check
      _
    $region19: #{tpu_custom_call.1} parent=1 // pred_check_branch
      %37 = sbr.rel (0) target = $region21
    $region20: #{tpu_custom_call.1} parent=1 // pred_region
      %38 = dma.done [#allocation6], 128
    $region21: #{tpu_custom_call.1} parent=1 // pred_fallthru
      _
    %v39 = vld [vmem:[#allocation5] sm:$0xff]
    %v40 = vld [vmem:[#allocation2] sm:$0xff]
    %v41 = vld [vmem:[#allocation2 + $0x8] sm:$0xff]
    %v42 = vld [vmem:[%s2] sm:$0xf]
    %44 = vset.pattern.permute.xlu0 0
    %45 = vperm.xlu0 %44, %v42
    %v46 = vpop.permute.xlu0 %45
    %v49 = vcombine.high %v39, %v39
    %51 = vmatprep.subr.mxu0 0.0
    %52 = vmatpush1.xpose.msra.mxu0 0.0
    %53 = vmatprep.subr.mxu0 0.0
    %54 = vmatpush1.xpose.msra.mxu0 0.0
    %55 = vmatprep.subr.mxu0 0.0
    %56 = vmatpush1.xpose.msra.mxu0 0.0
    %57 = vmatprep.subr.mxu0 0.0
    %58 = vmatpush1.xpose.msra.mxu0 0.0
    %59 = vmatprep.subr.mxu0 0.0
    %60 = vmatpush1.xpose.msra.mxu0 0.0
    %61 = vmatprep.subr.mxu0 0.0
    %62 = vmatpush1.xpose.msra.mxu0 0.0
    %63 = vmatprep.subr.mxu0 0.0
    %64 = vmatpush1.xpose.msra.mxu0 0.0
    %65 = vmatprep.subr.mxu0 0.0
    %66 = vmatpush1.xpose.msra.mxu0 0.0
    %67 = vmatprep.subr.mxu0 0.0
    %68 = vmatpush1.xpose.msra.mxu0 0.0
    %69 = vmatprep.subr.mxu0 0.0
    %70 = vmatpush1.xpose.msra.mxu0 0.0
    %71 = vmatprep.subr.mxu0 0.0
    %72 = vmatpush1.xpose.msra.mxu0 0.0
    %73 = vmatprep.subr.mxu0 0.0
    %74 = vmatpush1.xpose.msra.mxu0 0.0
    %75 = vmatprep.subr.mxu0 0.0
    %76 = vmatpush1.xpose.msra.mxu0 0.0
    %77 = vmatprep.subr.mxu0 0.0
    %78 = vmatpush1.xpose.msra.mxu0 0.0
    %79 = vmatprep.subr.mxu0 0.0
    %80 = vmatpush1.xpose.msra.mxu0 0.0
    %81 = vmatprep.subr.mxu0 %v41
    %82 = vmatpush1.xpose.msra.mxu0 %v40
    %83 = vmatprep.subr.mxu0 0.0
    %84 = vmatpush2.xpose.msra.mxu0 0.0
    %85 = vmatprep.subr.mxu0 0.0
    %86 = vmatpush2.xpose.msra.mxu0 0.0
    %87 = vmatprep.subr.mxu0 0.0
    %88 = vmatpush2.xpose.msra.mxu0 0.0
    %89 = vmatprep.subr.mxu0 0.0
    %90 = vmatpush2.xpose.msra.mxu0 0.0
    %91 = vmatprep.subr.mxu0 0.0
    %92 = vmatpush2.xpose.msra.mxu0 0.0
    %93 = vmatprep.subr.mxu0 0.0
    %94 = vmatpush2.xpose.msra.mxu0 0.0
    %95 = vmatprep.subr.mxu0 0.0
    %96 = vmatpush2.xpose.msra.mxu0 0.0
    %97 = vmatprep.subr.mxu0 0.0
    %98 = vmatpush2.xpose.msra.mxu0 0.0
    %99 = vmatprep.subr.mxu0 0.0
    %100 = vmatpush2.xpose.msra.mxu0 0.0
    %101 = vmatprep.subr.mxu0 0.0
    %102 = vmatpush2.xpose.msra.mxu0 0.0
    %103 = vmatprep.subr.mxu0 0.0
    %104 = vmatpush2.xpose.msra.mxu0 0.0
    %105 = vmatprep.subr.mxu0 0.0
    %106 = vmatpush2.xpose.msra.mxu0 0.0
    %107 = vmatprep.subr.mxu0 0.0
    %108 = vmatpush2.xpose.msra.mxu0 0.0
    %109 = vmatprep.subr.mxu0 0.0
    %110 = vmatpush2.xpose.msra.mxu0 0.0
    %111 = vmatprep.subr.mxu0 0.0
    %112 = vmatpush2.xpose.msra.mxu0 0.0
    %113 = vmatprep.subr.mxu0 0.0
    %114 = vmatpush2.xpose.msra.mxu0 0.0
    %115 = vmatprep.mubr.f32.mxu0 %v49
    %116 = vmatmul.mubr.f32.gmra.mxu0 %v39
    %v117 = vpop.f32.mrf.mxu0
    %v118 = vadd.f32 %v46, %v117
    %v119 = vpop.f32.mrf.mxu0
    %120 = vdwg.mxu0
    %v121 = vmul.f32 %v118, 0.5
    %v122 = vmul.f32 %v118, 0.70710677
    %v123 = vand.u32 2147483647, %v122
    %v124 = vmul.f32 %v123, 0.3275911
    %v125 = vadd.f32 %v124, 1.0
    %v126 = vrcp.pop %v125
    %v127 = vmul.f32 1.0, %v126
    %v128 = vmul.f32 %v127, 1.0614054
    %v129 = vadd.f32 %v128, -1.4531521
    %v130 = vmul.f32 %v129, %v127
    %v131 = vadd.f32 %v130, 1.4214138
    %v132 = vmul.f32 %v131, %v127
    %v133 = vadd.f32 %v132, -0.28449672
    %v134 = vmul.f32 %v133, %v127
    %v135 = vadd.f32 %v134, 0.2548296
    %v136 = vmul.f32 %v135, %v127
    %v137 = vsub.f32 0.0, %v123
    %v138 = vmul.f32 %v137, %v123
    %v139 = vmul.f32 %v138, 1.442695
    %v140 = vpow.pop %v139
    %v141 = vmul.f32 %v136, %v140
    %v142 = vsub.f32 1.0, %v141
    %vm143 = vcmp.ge.f32.partialorder %v122, 0.0
    %v144 = vsub.f32 0.0, %v142
    %v145 = vsel %vm143, %v142, %v144
    %v146 = vadd.f32 %v145, 1.0
    %v147 = vmul.f32 %v121, %v146
    %vm148 = vcmask 60416
    %149 = vst.msk [vmem:[#allocation7] sm:$0xf] %vm148, %v147
    // Predicated region
    $region22: #{tpu_custom_call.1} parent=1 // pred_check
      _
    $region23: #{tpu_custom_call.1} parent=1 // pred_check_branch
      %151 = sbr.rel (0) target = $region25
    $region24: #{tpu_custom_call.1} parent=1 // pred_region
      %s153 = ssub.s32 64, 64
      %154 = vsyncadd [#allocation4], %s153
      %s156 = sshll.u32 [#allocation7], 4
      %s157 = int_to_ptr.vmem [resolvable:$true] %s156
      %159 = dma.vmem_to_hbm [thread:$0]  %s157, 64, %s3, [#allocation4]
    $region25: #{tpu_custom_call.1} parent=1 // pred_fallthru
      _
    // Predicated region
    $region26: #{tpu_custom_call.1} parent=1 // pred_check
      _
    $region27: #{tpu_custom_call.1} parent=1 // pred_check_branch
      %161 = sbr.rel (0) target = $region29
    $region28: #{tpu_custom_call.1} parent=1 // pred_region
      %162 = dma.done [#allocation4], 64
    $region29: #{tpu_custom_call.1} parent=1 // pred_fallthru
      _
    %163 = vsyncpa [#allocation3], 1
    %164 = vsyncpa [#allocation6], 1
    %165 = vsyncpa [#allocation4], 1

</llo_original>
